<compile_context>
chip_gen: v7x
topology: tpu7x:2x2x1
jax: 0.10.0
libtpu: 0.0.40
codegen_flags: <defaults>
</compile_context>

<pallas_src>
import jax
import jax.numpy as jnp
from jax import lax
from jax.experimental import pallas as pl
from jax.experimental.pallas import tpu as pltpu


def _round_up(x: int, m: int) -> int:
    return ((x + m - 1) // m) * m


def _cdiv(a: int, b: int) -> int:
    return -(-a // b)


def _tpu_vmem_capacity_bytes() -> int:
    try:
        info = pltpu.get_tpu_info()
        cap = getattr(info, "vmem_capacity_bytes", None)
        if cap:
            return int(cap)
    except Exception:
        pass
    return 64 << 20  # conservative default (v7x per-TensorCore VMEM)


def _default_num_splits() -> int:
    """2 only on multi-TensorCore chips (v7x); 1 elsewhere (plain loop otherwise)."""
    try:
        info = pltpu.get_tpu_info()
        for name in ("num_cores", "core_count", "num_tensorcores", "tensorcore_count"):
            v = getattr(info, name, None)
            if v:
                return max(1, min(2, int(v)))
    except Exception:
        pass
    return 1


def _make_confusion_kernel(n_valid: int, tiles_per_split: int):
    """Accumulates per-class int32 rows [TP; #pred; #target] into counts_ref."""

    def kernel(preds_ref, target_ref, counts_ref):
        split = pl.program_id(0)   # outer "parallel" (core-split) axis
        i = pl.program_id(1)       # inner "arbitrary" reduction axis

        @pl.when(i == 0)
        def _init():
            counts_ref[...] = jnp.zeros_like(counts_ref)

        p = preds_ref[...]         # (TN, C), input dtype (f32 or bf16)
        t = target_ref[...]        # (TN, 1) int32
        tn, c = p.shape

        col = lax.broadcasted_iota(jnp.int32, (tn, c), 1)

        # argmax over classes with first-occurrence tie-break (== torch.argmax).
        # NOTE: rows whose max is NaN get no predicted class (counted only as
        # FN for their target class).
        m = jnp.max(p, axis=-1, keepdims=True)
        is_max = p == m
        pred_idx = jnp.min(jnp.where(is_max, col, c), axis=-1, keepdims=True)

        ones_row = jnp.ones((1, tn), jnp.bfloat16)   # constant, lane-major

        def accumulate(valid):
            pred_oh = col == pred_idx
            targ_oh = col == t
            if valid is not None:             # tail tile only
                pred_oh = pred_oh & valid
                targ_oh = targ_oh & valid
            pred_oh = pred_oh.astype(jnp.bfloat16)
            targ_oh = targ_oh.astype(jnp.bfloat16)
            tp_oh = pred_oh * targ_oh         # exact 0/1 products

            # Column sums on the (otherwise idle) MXU instead of three VPU
            # reduction trees.  Exact: 0/1 values, per-tile sums <= TN << 2^24,
            # f32 accumulation, cast back to int32.
            tp = jnp.dot(ones_row, tp_oh, preferred_element_type=jnp.float32)
            sp = jnp.dot(ones_row, pred_oh, preferred_element_type=jnp.float32)
            st = jnp.dot(ones_row, targ_oh, preferred_element_type=jnp.float32)

            counts_ref[0:1, :] += tp.astype(jnp.int32)
            counts_ref[1:2, :] += sp.astype(jnp.int32)
            counts_ref[2:3, :] += st.astype(jnp.int32)

        tile_start = (split * tiles_per_split + i) * tn
        fully_valid = tile_start + tn <= n_valid

        # Fast path: interior tiles skip all tail-mask construction.
        @pl.when(fully_valid)
        def _interior():
            accumulate(None)

        @pl.when(jnp.logical_not(fully_valid))
        def _tail():
            row = lax.broadcasted_iota(jnp.int32, (tn, 1), 0)
            accumulate(tile_start + row < n_valid)

    return kernel


def _confusion_counts(preds, target, num_classes, tile_n=None, num_splits=None,
                      vmem_limit_bytes=None):
    """Returns float32 per-class (tp, fp, fn) for one (preds, target) batch."""
    n, c = preds.shape
    assert c == num_classes, (c, num_classes)

    target2d = target.astype(jnp.int32).reshape(n, 1)

    itemsize = jnp.dtype(preds.dtype).itemsize
    c_pad = _round_up(num_classes, 128)
    # Double-buffered per-row VMEM: lane-padded preds row + the (TN, 1) int32
    # target block, which Mosaic lane-pads to 128 lanes (budget it explicitly).
    bytes_per_row = c_pad * itemsize + 128 * 4

    cap = _tpu_vmem_capacity_bytes()
    if tile_n is None:
        budget = min(cap // 2, 48 << 20)
        tile_n = max(8, budget // (2 * bytes_per_row))
        tile_n = min(tile_n, 8192)   # per-grid-step overhead already < ~5% here

    tile = min(int(tile_n), _round_up(max(n, 8), 8))
    tile = max(8, _round_up(tile, 8))

    if num_splits is None:
        num_splits = _default_num_splits()
    splits = max(1, min(int(num_splits), _cdiv(n, tile)))
    tiles_per_split = _cdiv(n, tile * splits)
    padded_n = tile * splits * tiles_per_split

    if padded_n != n:
        pad = padded_n - n
        preds = jnp.pad(preds, ((0, pad), (0, 0)))
        target2d = jnp.pad(target2d, ((0, pad), (0, 0)))

    if vmem_limit_bytes is None:
        needed = 2 * tile * bytes_per_row + (2 << 20)
        vmem_limit_bytes = min(max(needed, 16 << 20), max(16 << 20, int(cap * 0.9)))

    def in_map(s, i):
        return (s * tiles_per_split + i, 0)

    partial = pl.pallas_call(
        _make_confusion_kernel(n, tiles_per_split),
        out_shape=jax.ShapeDtypeStruct((splits, 3, num_classes), jnp.int32),
        grid_spec=pltpu.PrefetchScalarGridSpec(
            num_scalar_prefetch=0,
            grid=(splits, tiles_per_split),
            in_specs=[
                pl.BlockSpec((tile, num_classes), in_map),
                pl.BlockSpec((tile, 1), in_map),
            ],
            # Leading dim squeezed: each split keeps a resident (3, C) block.
            out_specs=pl.BlockSpec((None, 3, num_classes), lambda s, i: (s, 0, 0)),
        ),
        compiler_params=pltpu.CompilerParams(
            dimension_semantics=("parallel", "arbitrary"),
            vmem_limit_bytes=int(vmem_limit_bytes)),
    )(preds, target2d)

    # Combine tiny per-split partial tables; form FP / FN once on the host.
    counts = jnp.sum(partial, axis=0).astype(jnp.float32)   # (3, C): [tp, sp, st]
    tp, sp, st = counts[0], counts[1], counts[2]
    return tp, sp - tp, st - tp                              # tp, fp, fn


def _safe_divide(num, den):
    den_ok = jnp.where(den == 0, 1.0, den)
    return jnp.where(den == 0, 0.0, num / den_ok)


def _finalize(tp, fp, fn, average):
    """torchmetrics Multiclass{Precision,Recall,F1Score} finalize (zero_division=0)."""
    if average == "micro":
        p = _safe_divide(jnp.sum(tp), jnp.sum(tp) + jnp.sum(fp))
        r = _safe_divide(jnp.sum(tp), jnp.sum(tp) + jnp.sum(fn))
        f = _safe_divide(2.0 * jnp.sum(tp), 2.0 * jnp.sum(tp) + jnp.sum(fp) + jnp.sum(fn))
        return p, r, f

    precision = _safe_divide(tp, tp + fp)
    recall = _safe_divide(tp, tp + fn)
    f1 = _safe_divide(2.0 * tp, 2.0 * tp + fp + fn)

    if average is None or average == "none":
        return precision, recall, f1

    if average == "weighted":
        weights = tp + fn
    else:  # "macro": classes that never appear (no tp/fp/fn) are excluded
        weights = jnp.where(tp + fp + fn > 0, 1.0, 0.0)

    def _avg(score):
        return _safe_divide(jnp.sum(score * weights), jnp.sum(weights))

    return _avg(precision), _avg(recall), _avg(f1)


def precision_recall_f1(preds, target, num_classes, average="macro",
                        tile_n=None, num_splits=None, vmem_limit_bytes=None):
    """Mirrors PrecisionRecallF1.forward for a single (preds, target) batch."""
    # TODO(synk): torchmetrics' cross-call running state (update/compute/reset)
    # is host-side bookkeeping; this implements the single-batch forward.
    tp, fp, fn = _confusion_counts(preds, target, num_classes,
                                   tile_n=tile_n, num_splits=num_splits,
                                   vmem_limit_bytes=vmem_limit_bytes)
    return _finalize(tp, fp, fn, average)


def _reference_counts(preds, target, num_classes):
    """Pure-JAX confusion counts for correctness checking."""
    pred_lbl = jnp.argmax(preds, axis=-1)
    cls = jnp.arange(num_classes)
    pred_oh = pred_lbl[:, None] == cls[None, :]
    targ_oh = target[:, None] == cls[None, :]
    tp = jnp.sum(pred_oh & targ_oh, axis=0).astype(jnp.float32)
    fp = jnp.sum(pred_oh & ~targ_oh, axis=0).astype(jnp.float32)
    fn = jnp.sum(~pred_oh & targ_oh, axis=0).astype(jnp.float32)
    return tp, fp, fn


if __name__ == "__main__":
    NUM_CLASSES = 10
    N = 200  # deliberately not a multiple of the tile size -> exercises tail masking

    key = jax.random.PRNGKey(0)
    k_preds, k_tgt = jax.random.split(key)
    preds = jax.random.normal(k_preds, (N, NUM_CLASSES), dtype=jnp.float32)
    target = jax.random.randint(k_tgt, (N,), 0, NUM_CLASSES, dtype=jnp.int32)

    tp_r, fp_r, fn_r = _reference_counts(preds, target, NUM_CLASSES)

    # Small tiles + explicit 2-way split: multi-tile grid, parallel core split,
    # interior fast path AND the tail-masked path are all exercised.
    for avg in ("macro", "micro", "weighted", None):
        got = precision_recall_f1(preds, target, NUM_CLASSES, average=avg,
                                  tile_n=64, num_splits=2)
        jax.block_until_ready(got)
        want = _finalize(tp_r, fp_r, fn_r, avg)
        for g, w in zip(got, want):
            assert jnp.allclose(g, w, atol=1e-6), (avg, g, w)

    # Default auto-sized path (tile / splits / vmem limit derived from the chip).
    got = precision_recall_f1(preds, target, NUM_CLASSES, average="macro")
    jax.block_until_ready(got)
    want = _finalize(tp_r, fp_r, fn_r, "macro")
    for g, w in zip(got, want):
        assert jnp.allclose(g, w, atol=1e-6), (g, w)

    # bf16 preds path (halves the HBM stream; argmax stays in bf16).
    preds_bf = preds.astype(jnp.bfloat16)
    tp_b, fp_b, fn_b = _reference_counts(preds_bf, target, NUM_CLASSES)
    got = precision_recall_f1(preds_bf, target, NUM_CLASSES, average="macro",
                              tile_n=64, num_splits=2)
    jax.block_until_ready(got)
    want = _finalize(tp_b, fp_b, fn_b, "macro")
    for g, w in zip(got, want):
        assert jnp.allclose(g, w, atol=1e-6), (g, w)

    print("KERNEL_OK")
</pallas_src>

<mosaic_0001>
module attributes {stable_mosaic.version = 11 : i64} {
  func.func @kernel(%arg0: i32, %arg1: i32, %arg2: memref<64x10xf32, #tpu.memory_space<vmem>>, %arg3: memref<64x1xi32, #tpu.memory_space<vmem>>, %arg4: memref<1x3x10xi32, #tpu.memory_space<vmem>>) attributes {dimension_semantics = [#tpu.dimension_semantics<parallel>, #tpu.dimension_semantics<arbitrary>], iteration_bounds = array<i64: 2, 2>, scalar_prefetch = 0 : i64, scratch_operands = 0 : i64, tpu.core_type = #tpu.core_type<tc>, window_params = [{transform_indices = @transform_0, window_bounds = array<i64: 64, 10>}, {transform_indices = @transform_1, window_bounds = array<i64: 64, 1>}, {transform_indices = @transform_2, window_bounds = array<i64: 1, 3, 10>}]} {
    %c0_i32 = arith.constant 0 : i32
    %0 = arith.cmpi eq, %arg1, %c0_i32 : i32
    %1 = arith.extui %0 : i1 to i32
    %c0_i32_0 = arith.constant 0 : i32
    %2 = arith.cmpi ne, %1, %c0_i32_0 : i32
    scf.if %2 {
      %c0_i32_9 = arith.constant 0 : i32
      %25 = vector.broadcast %c0_i32_9 : i32 to vector<3x10xi32>
      %c0_10 = arith.constant 0 : index
      %c0_11 = arith.constant 0 : index
      %c0_12 = arith.constant 0 : index
      %26 = vector.load %arg4[%c0_10, %c0_11, %c0_12] : memref<1x3x10xi32, #tpu.memory_space<vmem>>, vector<1x3x10xi32>
      %27 = vector.shape_cast %26 : vector<1x3x10xi32> to vector<3x10xi32>
      %28 = vector.shape_cast %25 : vector<3x10xi32> to vector<1x3x10xi32>
      tpu.vector_store %arg4[%c0_10, %c0_11, %c0_12], %28 {strides = array<i32>} : memref<1x3x10xi32, #tpu.memory_space<vmem>>, vector<1x3x10xi32>,
    } else {
    }
    %c0 = arith.constant 0 : index
    %c0_1 = arith.constant 0 : index
    %3 = vector.load %arg2[%c0, %c0_1] : memref<64x10xf32, #tpu.memory_space<vmem>>, vector<64x10xf32>
    %c0_2 = arith.constant 0 : index
    %c0_3 = arith.constant 0 : index
    %4 = vector.load %arg3[%c0_2, %c0_3] : memref<64x1xi32, #tpu.memory_space<vmem>>, vector<64x1xi32>
    %5 = tpu.iota {dimensions = array<i32: 1>} : vector<64x10xi32>
    %cst = arith.constant dense<0xFF800000> : vector<64xf32>
    %6 = vector.multi_reduction <maximumf>, %3, %cst [1] : vector<64x10xf32> to vector<64xf32>
    %7 = vector.shape_cast %6 : vector<64xf32> to vector<64x1xf32>
    %8 = vector.broadcast %7 : vector<64x1xf32> to vector<64x10xf32>
    %9 = arith.cmpf oeq, %3, %8 : vector<64x10xf32>
    %c10_i32 = arith.constant 10 : i32
    %10 = vector.broadcast %c10_i32 : i32 to vector<64x10xi32>
    %11 = arith.select %9, %5, %10 : vector<64x10xi1>, vector<64x10xi32>
    %cst_4 = arith.constant dense<2147483647> : vector<64xi32>
    %12 = vector.multi_reduction <minsi>, %11, %cst_4 [1] : vector<64x10xi32> to vector<64xi32>
    %13 = vector.shape_cast %12 : vector<64xi32> to vector<64x1xi32>
    %cst_5 = arith.constant 1.000000e+00 : bf16
    %14 = vector.broadcast %cst_5 : bf16 to vector<1x64xbf16>
    %c2_i32 = arith.constant 2 : i32
    %15 = arith.muli %arg0, %c2_i32 : i32
    %16 = arith.addi %15, %arg1 : i32
    %c64_i32 = arith.constant 64 : i32
    %17 = arith.muli %16, %c64_i32 : i32
    %c64_i32_6 = arith.constant 64 : i32
    %18 = arith.addi %17, %c64_i32_6 : i32
    %c200_i32 = arith.constant 200 : i32
    %19 = arith.cmpi sle, %18, %c200_i32 : i32
    %20 = arith.extui %19 : i1 to i32
    %c0_i32_7 = arith.constant 0 : i32
    %21 = arith.cmpi ne, %20, %c0_i32_7 : i32
    scf.if %21 {
      %25 = vector.broadcast %13 : vector<64x1xi32> to vector<64x10xi32>
      %26 = arith.cmpi eq, %5, %25 : vector<64x10xi32>
      %27 = vector.broadcast %4 : vector<64x1xi32> to vector<64x10xi32>
      %28 = arith.cmpi eq, %5, %27 : vector<64x10xi32>
      %29 = arith.extui %26 : vector<64x10xi1> to vector<64x10xi32>
      %30 = arith.sitofp %29 : vector<64x10xi32> to vector<64x10xf32>
      %31 = arith.truncf %30 : vector<64x10xf32> to vector<64x10xbf16>
      %32 = arith.extui %28 : vector<64x10xi1> to vector<64x10xi32>
      %33 = arith.sitofp %32 : vector<64x10xi32> to vector<64x10xf32>
      %34 = arith.truncf %33 : vector<64x10xf32> to vector<64x10xbf16>
      %35 = arith.mulf %31, %34 : vector<64x10xbf16>
      %cst_9 = arith.constant dense<0.000000e+00> : vector<1x10xf32>
      %36 = tpu.matmul %14, %35, %cst_9 {dimension_numbers = #tpu.dot_dimension_numbers<[1], [0], [0], [1], [0, 0, 1, 1], [], []>} : vector<1x64xbf16>, vector<64x10xbf16>, vector<1x10xf32> -> vector<1x10xf32>
      %cst_10 = arith.constant dense<0.000000e+00> : vector<1x10xf32>
      %37 = tpu.matmul %14, %31, %cst_10 {dimension_numbers = #tpu.dot_dimension_numbers<[1], [0], [0], [1], [0, 0, 1, 1], [], []>} : vector<1x64xbf16>, vector<64x10xbf16>, vector<1x10xf32> -> vector<1x10xf32>
      %cst_11 = arith.constant dense<0.000000e+00> : vector<1x10xf32>
      %38 = tpu.matmul %14, %34, %cst_11 {dimension_numbers = #tpu.dot_dimension_numbers<[1], [0], [0], [1], [0, 0, 1, 1], [], []>} : vector<1x64xbf16>, vector<64x10xbf16>, vector<1x10xf32> -> vector<1x10xf32>
      %c0_12 = arith.constant 0 : index
      %c0_13 = arith.constant 0 : index
      %c0_14 = arith.constant 0 : index
      %39 = vector.load %arg4[%c0_12, %c0_13, %c0_14] : memref<1x3x10xi32, #tpu.memory_space<vmem>>, vector<1x1x10xi32>
      %40 = vector.shape_cast %39 : vector<1x1x10xi32> to vector<1x10xi32>
      %41 = arith.fptosi %36 : vector<1x10xf32> to vector<1x10xi32>
      %42 = arith.addi %40, %41 : vector<1x10xi32>
      %c0_15 = arith.constant 0 : index
      %c0_16 = arith.constant 0 : index
      %c0_17 = arith.constant 0 : index
      %43 = vector.load %arg4[%c0_15, %c0_16, %c0_17] : memref<1x3x10xi32, #tpu.memory_space<vmem>>, vector<1x1x10xi32>
      %44 = vector.shape_cast %43 : vector<1x1x10xi32> to vector<1x10xi32>
      %45 = vector.shape_cast %42 : vector<1x10xi32> to vector<1x1x10xi32>
      tpu.vector_store %arg4[%c0_15, %c0_16, %c0_17], %45 {strides = array<i32>} : memref<1x3x10xi32, #tpu.memory_space<vmem>>, vector<1x1x10xi32>,
      %c0_18 = arith.constant 0 : index
      %c1 = arith.constant 1 : index
      %c0_19 = arith.constant 0 : index
      %46 = vector.load %arg4[%c0_18, %c1, %c0_19] : memref<1x3x10xi32, #tpu.memory_space<vmem>>, vector<1x1x10xi32>
      %47 = vector.shape_cast %46 : vector<1x1x10xi32> to vector<1x10xi32>
      %48 = arith.fptosi %37 : vector<1x10xf32> to vector<1x10xi32>
      %49 = arith.addi %47, %48 : vector<1x10xi32>
      %c0_20 = arith.constant 0 : index
      %c1_21 = arith.constant 1 : index
      %c0_22 = arith.constant 0 : index
      %50 = vector.load %arg4[%c0_20, %c1_21, %c0_22] : memref<1x3x10xi32, #tpu.memory_space<vmem>>, vector<1x1x10xi32>
      %51 = vector.shape_cast %50 : vector<1x1x10xi32> to vector<1x10xi32>
      %52 = vector.shape_cast %49 : vector<1x10xi32> to vector<1x1x10xi32>
      tpu.vector_store %arg4[%c0_20, %c1_21, %c0_22], %52 {strides = array<i32>} : memref<1x3x10xi32, #tpu.memory_space<vmem>>, vector<1x1x10xi32>,
      %c0_23 = arith.constant 0 : index
      %c2 = arith.constant 2 : index
      %c0_24 = arith.constant 0 : index
      %53 = vector.load %arg4[%c0_23, %c2, %c0_24] : memref<1x3x10xi32, #tpu.memory_space<vmem>>, vector<1x1x10xi32>
      %54 = vector.shape_cast %53 : vector<1x1x10xi32> to vector<1x10xi32>
      %55 = arith.fptosi %38 : vector<1x10xf32> to vector<1x10xi32>
      %56 = arith.addi %54, %55 : vector<1x10xi32>
      %c0_25 = arith.constant 0 : index
      %c2_26 = arith.constant 2 : index
      %c0_27 = arith.constant 0 : index
      %57 = vector.load %arg4[%c0_25, %c2_26, %c0_27] : memref<1x3x10xi32, #tpu.memory_space<vmem>>, vector<1x1x10xi32>
      %58 = vector.shape_cast %57 : vector<1x1x10xi32> to vector<1x10xi32>
      %59 = vector.shape_cast %56 : vector<1x10xi32> to vector<1x1x10xi32>
      tpu.vector_store %arg4[%c0_25, %c2_26, %c0_27], %59 {strides = array<i32>} : memref<1x3x10xi32, #tpu.memory_space<vmem>>, vector<1x1x10xi32>,
    } else {
    }
    %true = arith.constant true
    %22 = arith.xori %19, %true : i1
    %23 = arith.extui %22 : i1 to i32
    %c0_i32_8 = arith.constant 0 : i32
    %24 = arith.cmpi ne, %23, %c0_i32_8 : i32
    scf.if %24 {
      %25 = tpu.iota {dimensions = array<i32: 0>} : vector<64x1xi32>
      %26 = vector.broadcast %17 : i32 to vector<64x1xi32>
      %27 = arith.addi %26, %25 : vector<64x1xi32>
      %c200_i32_9 = arith.constant 200 : i32
      %28 = vector.broadcast %c200_i32_9 : i32 to vector<64x1xi32>
      %29 = arith.cmpi slt, %27, %28 : vector<64x1xi32>
      %30 = vector.broadcast %13 : vector<64x1xi32> to vector<64x10xi32>
      %31 = arith.cmpi eq, %5, %30 : vector<64x10xi32>
      %32 = vector.broadcast %4 : vector<64x1xi32> to vector<64x10xi32>
      %33 = arith.cmpi eq, %5, %32 : vector<64x10xi32>
      %34 = vector.broadcast %29 : vector<64x1xi1> to vector<64x10xi1>
      %35 = arith.andi %31, %34 : vector<64x10xi1>
      %36 = vector.broadcast %29 : vector<64x1xi1> to vector<64x10xi1>
      %37 = arith.andi %33, %36 : vector<64x10xi1>
      %38 = arith.extui %35 : vector<64x10xi1> to vector<64x10xi32>
      %39 = arith.sitofp %38 : vector<64x10xi32> to vector<64x10xf32>
      %40 = arith.truncf %39 : vector<64x10xf32> to vector<64x10xbf16>
      %41 = arith.extui %37 : vector<64x10xi1> to vector<64x10xi32>
      %42 = arith.sitofp %41 : vector<64x10xi32> to vector<64x10xf32>
      %43 = arith.truncf %42 : vector<64x10xf32> to vector<64x10xbf16>
      %44 = arith.mulf %40, %43 : vector<64x10xbf16>
      %cst_10 = arith.constant dense<0.000000e+00> : vector<1x10xf32>
      %45 = tpu.matmul %14, %44, %cst_10 {dimension_numbers = #tpu.dot_dimension_numbers<[1], [0], [0], [1], [0, 0, 1, 1], [], []>} : vector<1x64xbf16>, vector<64x10xbf16>, vector<1x10xf32> -> vector<1x10xf32>
      %cst_11 = arith.constant dense<0.000000e+00> : vector<1x10xf32>
      %46 = tpu.matmul %14, %40, %cst_11 {dimension_numbers = #tpu.dot_dimension_numbers<[1], [0], [0], [1], [0, 0, 1, 1], [], []>} : vector<1x64xbf16>, vector<64x10xbf16>, vector<1x10xf32> -> vector<1x10xf32>
      %cst_12 = arith.constant dense<0.000000e+00> : vector<1x10xf32>
      %47 = tpu.matmul %14, %43, %cst_12 {dimension_numbers = #tpu.dot_dimension_numbers<[1], [0], [0], [1], [0, 0, 1, 1], [], []>} : vector<1x64xbf16>, vector<64x10xbf16>, vector<1x10xf32> -> vector<1x10xf32>
      %c0_13 = arith.constant 0 : index
      %c0_14 = arith.constant 0 : index
      %c0_15 = arith.constant 0 : index
      %48 = vector.load %arg4[%c0_13, %c0_14, %c0_15] : memref<1x3x10xi32, #tpu.memory_space<vmem>>, vector<1x1x10xi32>
      %49 = vector.shape_cast %48 : vector<1x1x10xi32> to vector<1x10xi32>
      %50 = arith.fptosi %45 : vector<1x10xf32> to vector<1x10xi32>
      %51 = arith.addi %49, %50 : vector<1x10xi32>
      %c0_16 = arith.constant 0 : index
      %c0_17 = arith.constant 0 : index
      %c0_18 = arith.constant 0 : index
      %52 = vector.load %arg4[%c0_16, %c0_17, %c0_18] : memref<1x3x10xi32, #tpu.memory_space<vmem>>, vector<1x1x10xi32>
      %53 = vector.shape_cast %52 : vector<1x1x10xi32> to vector<1x10xi32>
      %54 = vector.shape_cast %51 : vector<1x10xi32> to vector<1x1x10xi32>
      tpu.vector_store %arg4[%c0_16, %c0_17, %c0_18], %54 {strides = array<i32>} : memref<1x3x10xi32, #tpu.memory_space<vmem>>, vector<1x1x10xi32>,
      %c0_19 = arith.constant 0 : index
      %c1 = arith.constant 1 : index
      %c0_20 = arith.constant 0 : index
      %55 = vector.load %arg4[%c0_19, %c1, %c0_20] : memref<1x3x10xi32, #tpu.memory_space<vmem>>, vector<1x1x10xi32>
      %56 = vector.shape_cast %55 : vector<1x1x10xi32> to vector<1x10xi32>
      %57 = arith.fptosi %46 : vector<1x10xf32> to vector<1x10xi32>
      %58 = arith.addi %56, %57 : vector<1x10xi32>
      %c0_21 = arith.constant 0 : index
      %c1_22 = arith.constant 1 : index
      %c0_23 = arith.constant 0 : index
      %59 = vector.load %arg4[%c0_21, %c1_22, %c0_23] : memref<1x3x10xi32, #tpu.memory_space<vmem>>, vector<1x1x10xi32>
      %60 = vector.shape_cast %59 : vector<1x1x10xi32> to vector<1x10xi32>
      %61 = vector.shape_cast %58 : vector<1x10xi32> to vector<1x1x10xi32>
      tpu.vector_store %arg4[%c0_21, %c1_22, %c0_23], %61 {strides = array<i32>} : memref<1x3x10xi32, #tpu.memory_space<vmem>>, vector<1x1x10xi32>,
      %c0_24 = arith.constant 0 : index
      %c2 = arith.constant 2 : index
      %c0_25 = arith.constant 0 : index
      %62 = vector.load %arg4[%c0_24, %c2, %c0_25] : memref<1x3x10xi32, #tpu.memory_space<vmem>>, vector<1x1x10xi32>
      %63 = vector.shape_cast %62 : vector<1x1x10xi32> to vector<1x10xi32>
      %64 = arith.fptosi %47 : vector<1x10xf32> to vector<1x10xi32>
      %65 = arith.addi %63, %64 : vector<1x10xi32>
      %c0_26 = arith.constant 0 : index
      %c2_27 = arith.constant 2 : index
      %c0_28 = arith.constant 0 : index
      %66 = vector.load %arg4[%c0_26, %c2_27, %c0_28] : memref<1x3x10xi32, #tpu.memory_space<vmem>>, vector<1x1x10xi32>
      %67 = vector.shape_cast %66 : vector<1x1x10xi32> to vector<1x10xi32>
      %68 = vector.shape_cast %65 : vector<1x10xi32> to vector<1x1x10xi32>
      tpu.vector_store %arg4[%c0_26, %c2_27, %c0_28], %68 {strides = array<i32>} : memref<1x3x10xi32, #tpu.memory_space<vmem>>, vector<1x1x10xi32>,
    } else {
    }
    return
  }
  func.func @transform_0(%arg0: i32, %arg1: i32) -> (i32, i32) {
    %c2_i32 = arith.constant 2 : i32
    %0 = arith.muli %arg0, %c2_i32 : i32
    %1 = arith.addi %0, %arg1 : i32
    %c0_i32 = arith.constant 0 : i32
    %c0_i32_0 = arith.constant 0 : i32
    return %1, %c0_i32 : i32, i32
  }
  func.func @transform_1(%arg0: i32, %arg1: i32) -> (i32, i32) {
    %c2_i32 = arith.constant 2 : i32
    %0 = arith.muli %arg0, %c2_i32 : i32
    %1 = arith.addi %0, %arg1 : i32
    %c0_i32 = arith.constant 0 : i32
    %c0_i32_0 = arith.constant 0 : i32
    return %1, %c0_i32 : i32, i32
  }
  func.func @transform_2(%arg0: i32, %arg1: i32) -> (i32, i32, i32) {
    %c0_i32 = arith.constant 0 : i32
    %c0_i32_0 = arith.constant 0 : i32
    %c0_i32_1 = arith.constant 0 : i32
    return %arg0, %c0_i32, %c0_i32_0 : i32, i32, i32
  }
}

</mosaic_0001>

<llo_original>
// kernel: tpu_custom_call.1
$region0: #{tpu_custom_call.1}
  #allocation0 [shape = 'u32[]', space=smem, size = 0x4, offset = 0x4, fixed_abs, tag = 'smem constant byte address 0x4 - core index']
  #allocation1 [shape = 'u32[144,128]{1,0:T(1,128)}', space=vmem, size = 0x12000, scoped, tag = 'internal scratch']
  %s0 = inlined_call_operand.vmem [shape: f32[256,10], index: 0, kind: input, shape index: {}]
  %s1 = inlined_call_operand.vmem [shape: s32[256,1], index: 1, kind: input, shape index: {}]
  %s2 = inlined_call_operand.vmem [shape: s32[2,3,10], index: 2, kind: output, shape index: {}]
  %s3 = sld [smem:[#allocation0]]
  $region53: #{tpu_custom_call.1} parent=0
    _
  %s5 = ssub.s32 1, %s3
  %s6 = scalar_select 0, %s5, %s3
  loop: start=0, step=1, limit=6
  $region2: #{tpu_custom_call.1} parent=0 // loop_pre_header
    _
  $region3: #{tpu_custom_call.1} parent=0 // loop_header
    %s8 = sphi 0, %s12
    %p9 = scmp.ge.s32.totalorder %s8, 6
    %s15 = sphi 0, %s27
    %s16 = sphi 0, %s23
    %s17 = sphi 0, %s15
    %s18 = sphi 0, %s16
    %s19 = sphi 0, %s17
    %s20 = sphi 0, %s18
    %s34 = sphi 0, %s36
    %s37 = sphi 0, %s34
    %s38 = sphi 0, %s37
    %s54 = sphi 0, %s38
    %s64 = sphi 0, %s66
    %s67 = sphi 0, %s64
    %s68 = sphi 0, %s67
    %s84 = sphi 0, %s68
    %s90 = sphi 0, %s92
    %s93 = sphi 0, %s90
    %s94 = sphi 0, %s93
    %s110 = sphi 0, %s94
  $region4: #{tpu_custom_call.1} parent=0 // loop_header_branch
    %11 = sbr.rel (%p9) target = $region8
  $region5: #{tpu_custom_call.1} parent=0 // loop_body
    %s13 = ssub.s32 %s8, 1
    %s14 = ssub.s32 %s8, 2
    %s21 = sadd.s32 1, %s16
    %p22 = scmp.ge.s32.totalorder %s21, 2
    %s23 = scalar_select %p22, 0, %s21
    %s24 = sadd.s32 1, %s15
    %s25 = scalar_select %p22, %s24, %s15
    %p26 = scmp.ge.s32.totalorder %s25, 2
    %s27 = scalar_select %p26, 0, %s25
    %s28 = smul.u32 %s15, 2
    %s29 = sadd.s32 %s28, %s16
    %s30 = smul.u32 %s27, 2
    %s31 = sadd.s32 %s30, %s23
    %s32 = ssub.s32 %s29, %s31
    %p33 = scmp.eq.s32.totalorder %s32, 0
    %s35 = sadd.s32 %s34, 1
    %s36 = scalar_select %p33, %s34, %s35
    %p39 = pneg %p33
    %p40 = scmp.eq.s32.totalorder %s8, 3
    %p41 = por %p39, %p40
    %p42 = scmp.ne.s32.totalorder %s34, %s37
    %p43 = scmp.eq.s32.totalorder %s8, 0
    %p44 = por %p42, %p43
    %p45 = scmp.ne.s32.totalorder %s34, %s37
    %p46 = scmp.eq.s32.totalorder %s13, 3
    %p47 = por %p45, %p46
    %p48 = scmp.ne.s32.totalorder %s37, %s38
    %p49 = scmp.eq.s32.totalorder %s13, 0
    %p50 = por %p48, %p49
    %p51 = scmp.ne.s32.totalorder %s37, %s38
    %p52 = scmp.eq.s32.totalorder %s14, 3
    %p53 = por %p51, %p52
    %p55 = scmp.ne.s32.totalorder %s38, %s54
    %p56 = scmp.eq.s32.totalorder %s14, 0
    %p57 = por %p55, %p56
    %s58 = smul.u32 %s15, 2
    %s59 = sadd.s32 %s58, %s16
    %s60 = smul.u32 %s27, 2
    %s61 = sadd.s32 %s60, %s23
    %s62 = ssub.s32 %s59, %s61
    %p63 = scmp.eq.s32.totalorder %s62, 0
    %s65 = sadd.s32 %s64, 1
    %s66 = scalar_select %p63, %s64, %s65
    %p69 = pneg %p63
    %p70 = scmp.eq.s32.totalorder %s8, 3
    %p71 = por %p69, %p70
    %p72 = scmp.ne.s32.totalorder %s64, %s67
    %p73 = scmp.eq.s32.totalorder %s8, 0
    %p74 = por %p72, %p73
    %p75 = scmp.ne.s32.totalorder %s64, %s67
    %p76 = scmp.eq.s32.totalorder %s13, 3
    %p77 = por %p75, %p76
    %p78 = scmp.ne.s32.totalorder %s67, %s68
    %p79 = scmp.eq.s32.totalorder %s13, 0
    %p80 = por %p78, %p79
    %p81 = scmp.ne.s32.totalorder %s67, %s68
    %p82 = scmp.eq.s32.totalorder %s14, 3
    %p83 = por %p81, %p82
    %p85 = scmp.ne.s32.totalorder %s68, %s84
    %p86 = scmp.eq.s32.totalorder %s14, 0
    %p87 = por %p85, %p86
    %s88 = ssub.s32 %s15, %s27
    %p89 = scmp.eq.s32.totalorder %s88, 0
    %s91 = sadd.s32 %s90, 1
    %s92 = scalar_select %p89, %s90, %s91
    %p95 = pneg %p89
    %p96 = scmp.eq.s32.totalorder %s8, 3
    %p97 = por %p95, %p96
    %p98 = scmp.ne.s32.totalorder %s90, %s93
    %p99 = scmp.eq.s32.totalorder %s8, 0
    %p100 = por %p98, %p99
    %p101 = scmp.ne.s32.totalorder %s90, %s93
    %p102 = scmp.eq.s32.totalorder %s13, 3
    %p103 = por %p101, %p102
    %p104 = scmp.ne.s32.totalorder %s93, %s94
    %p105 = scmp.eq.s32.totalorder %s13, 0
    %p106 = por %p104, %p105
    %p107 = scmp.ne.s32.totalorder %s93, %s94
    %p108 = scmp.eq.s32.totalorder %s14, 3
    %p109 = por %p107, %p108
    %p111 = scmp.ne.s32.totalorder %s94, %s110
    %p112 = scmp.eq.s32.totalorder %s14, 0
    %p113 = por %p111, %p112
    %p114 = scmp.le.s32.totalorder 1, %s8
    %p115 = scmp.lt.s32.totalorder %s8, 5
    %p116 = pnand %p114, %p115
    %p117 = pneg %p116
    // Predicated region
    $region9: #{tpu_custom_call.1} parent=5 // pred_check
      _
    $region10: #{tpu_custom_call.1} parent=5 // pred_check_branch
      %119 = sbr.rel (%p116) target = $region12
    $region11: #{tpu_custom_call.1} parent=5 // pred_region
      %s120 = ssub.s32 %s8, 1
    $region12: #{tpu_custom_call.1} parent=5 // pred_fallthru
      _
    %p121 = scmp.lt.s32.totalorder %s8, 4
    // Predicated region
    $region13: #{tpu_custom_call.1} parent=5 // pred_check
      %p122 = pneg %p121
    $region14: #{tpu_custom_call.1} parent=5 // pred_check_branch
      %124 = sbr.rel (%p122) target = $region16
    $region15: #{tpu_custom_call.1} parent=5 // pred_region
      // Predicated region
      $region17: #{tpu_custom_call.1} parent=15 // pred_check
        %p125 = pneg %p44
      $region18: #{tpu_custom_call.1} parent=15 // pred_check_branch
        %127 = sbr.rel (%p125) target = $region20
      $region19: #{tpu_custom_call.1} parent=15 // pred_region
        %s128 = smul.u32 %s15, 2
        %s129 = sadd.s32 %s128, %s16
        %s130 = smul.u32 8, %s129
        %p131 = scmp.lt.s32.totalorder %s130, 31
        %s132 = scalar_select %p131, %s130, 31
        %s133 = smul.addr %s132, 8
        %s134 = scalar_lea.vmem %s0, %s133
        %s135 = smul.u32 %s15, 2
        %s136 = sadd.s32 %s135, %s16
        %s137 = smul.u32 8, %s136
      $region20: #{tpu_custom_call.1} parent=15 // pred_fallthru
        _
      // Predicated region
      $region21: #{tpu_custom_call.1} parent=15 // pred_check
        %p138 = pneg %p74
      $region22: #{tpu_custom_call.1} parent=15 // pred_check_branch
        %140 = sbr.rel (%p138) target = $region24
      $region23: #{tpu_custom_call.1} parent=15 // pred_region
        %s141 = smul.u32 %s15, 2
        %s142 = sadd.s32 %s141, %s16
        %s143 = smul.u32 8, %s142
        %p144 = scmp.lt.s32.totalorder %s143, 31
        %s145 = scalar_select %p144, %s143, 31
        %s146 = smul.addr %s145, 8
        %s147 = scalar_lea.vmem %s1, %s146
        %s148 = smul.u32 %s15, 2
        %s149 = sadd.s32 %s148, %s16
        %s150 = smul.u32 8, %s149
      $region24: #{tpu_custom_call.1} parent=15 // pred_fallthru
        _
    $region16: #{tpu_custom_call.1} parent=5 // pred_fallthru
      _
    %p151 = scmp.le.s32.totalorder 1, %s8
    %p152 = scmp.lt.s32.totalorder %s8, 5
    %p153 = pnand %p151, %p152
    %p154 = pneg %p153
    // Predicated region
    $region25: #{tpu_custom_call.1} parent=5 // pred_check
      _
    $region26: #{tpu_custom_call.1} parent=5 // pred_check_branch
      %156 = sbr.rel (%p153) target = $region28
    $region27: #{tpu_custom_call.1} parent=5 // pred_region
      %s157 = ssub.s32 %s8, 1
      %s158 = smul.u32 %s17, 2
      %s159 = sadd.s32 %s158, %s18
      %s160 = smul.u32 8, %s159
      %p161 = scmp.lt.s32.totalorder %s160, 31
      %s162 = scalar_select %p161, %s160, 31
      %s163 = smul.addr %s162, 8
      %s164 = scalar_lea.vmem %s0, %s163
      %p165 = pneg %p50
      %p166 = pneg %p47
      %s167 = smul.u32 %s17, 2
      %s168 = sadd.s32 %s167, %s18
      %s169 = smul.u32 8, %s168
      %p170 = scmp.lt.s32.totalorder %s169, 31
      %s171 = scalar_select %p170, %s169, 31
      %s172 = smul.addr %s171, 8
      %s173 = scalar_lea.vmem %s1, %s172
      %p174 = pneg %p80
      %p175 = pneg %p77
      %p176 = pneg %p106
      %p177 = pneg %p103
      %p178 = scmp.lt.s32.totalorder %s17, 1
      %s179 = scalar_select %p178, %s17, 1
      %s180 = smul.addr %s179, 4
      %s181 = scalar_lea.vmem %s2, %s180
      %s182 = smul.u32 %s17, 2
      %s183 = sadd.s32 %s182, %s18
      %s184 = smul.u32 8, %s183
      %p185 = scmp.lt.s32.totalorder %s184, 31
      %s186 = scalar_select %p185, %s184, 31
      %s187 = smul.addr %s186, 8
      %s188 = scalar_lea.vmem %s0, %s187
      %s189 = smul.u32 %s17, 2
      %s190 = sadd.s32 %s189, %s18
      %s191 = smul.u32 8, %s190
      %s192 = smul.u32 %s17, 2
      %s193 = sadd.s32 %s192, %s18
      %s194 = smul.u32 8, %s193
      %p195 = scmp.lt.s32.totalorder %s194, 31
      %s196 = scalar_select %p195, %s194, 31
      %s197 = smul.addr %s196, 8
      %s198 = scalar_lea.vmem %s1, %s197
      %s199 = smul.u32 %s17, 2
      %s200 = sadd.s32 %s199, %s18
      %s201 = smul.u32 8, %s200
      %p202 = scmp.lt.s32.totalorder %s17, 1
      %s203 = scalar_select %p202, %s17, 1
      %s204 = smul.addr %s203, 4
      %s205 = scalar_lea.vmem %s2, %s204
      %p208 = scmp.eq.s32.totalorder %s18, 0
      // Predicated region
      $region29: #{tpu_custom_call.1} parent=27 // pred_check
        %p209 = pneg %p208
      $region30: #{tpu_custom_call.1} parent=27 // pred_check_branch
        %211 = sbr.rel (%p209) target = $region32
      $region31: #{tpu_custom_call.1} parent=27 // pred_region
        %vm212 = vcmask 75776
        %213 = vst.msk [vmem:[%s205] sm:$0x7] %vm212, 0
      $region32: #{tpu_custom_call.1} parent=27 // pred_fallthru
        _
      %v214 = vld [vmem:[%s188] sm:$0xff]
      %v215 = vld [vmem:[%s188 + $0x8] sm:$0xff]
      %v216 = vld [vmem:[%s188 + $0x10] sm:$0xff]
      %v217 = vld [vmem:[%s188 + $0x18] sm:$0xff]
      %v218 = vld [vmem:[%s188 + $0x20] sm:$0xff]
      %v219 = vld [vmem:[%s188 + $0x28] sm:$0xff]
      %v220 = vld [vmem:[%s188 + $0x30] sm:$0xff]
      %v221 = vld [vmem:[%s188 + $0x38] sm:$0xff]
      %v222 = vld [vmem:[%s198] sm:$0xff]
      %v223 = vld [vmem:[%s198 + $0x8] sm:$0xff]
      %v224 = vld [vmem:[%s198 + $0x10] sm:$0xff]
      %v225 = vld [vmem:[%s198 + $0x18] sm:$0xff]
      %v226 = vld [vmem:[%s198 + $0x20] sm:$0xff]
      %v227 = vld [vmem:[%s198 + $0x28] sm:$0xff]
      %v228 = vld [vmem:[%s198 + $0x30] sm:$0xff]
      %v229 = vld [vmem:[%s198 + $0x38] sm:$0xff]
      %v230 = vlaneseq
      %v231 = vand.u32 %v230, 127
      %vm232 = vcmask 80896
      %v233 = vsel %vm232, %v214, -inf
      %234 = vmax.xlane.f32.xlu0 %v233
      %v235 = vpop.xlane.xlu0 %234
      %v236 = vsel %vm232, %v215, -inf
      %237 = vmax.xlane.f32.xlu0 %v236
      %v238 = vpop.xlane.xlu0 %237
      %v239 = vsel %vm232, %v216, -inf
      %240 = vmax.xlane.f32.xlu0 %v239
      %v241 = vpop.xlane.xlu0 %240
      %v242 = vsel %vm232, %v217, -inf
      %243 = vmax.xlane.f32.xlu0 %v242
      %v244 = vpop.xlane.xlu0 %243
      %v245 = vsel %vm232, %v218, -inf
      %246 = vmax.xlane.f32.xlu0 %v245
      %v247 = vpop.xlane.xlu0 %246
      %v248 = vsel %vm232, %v219, -inf
      %249 = vmax.xlane.f32.xlu0 %v248
      %v250 = vpop.xlane.xlu0 %249
      %v251 = vsel %vm232, %v220, -inf
      %252 = vmax.xlane.f32.xlu0 %v251
      %v253 = vpop.xlane.xlu0 %252
      %v254 = vsel %vm232, %v221, -inf
      %255 = vmax.xlane.f32.xlu0 %v254
      %v256 = vpop.xlane.xlu0 %255
      %vm257 = vcmp.eq.f32.partialorder %v214, %v235
      %vm258 = vcmp.eq.f32.partialorder %v215, %v238
      %vm259 = vcmp.eq.f32.partialorder %v216, %v241
      %vm260 = vcmp.eq.f32.partialorder %v217, %v244
      %vm261 = vcmp.eq.f32.partialorder %v218, %v247
      %vm262 = vcmp.eq.f32.partialorder %v219, %v250
      %vm263 = vcmp.eq.f32.partialorder %v220, %v253
      %vm264 = vcmp.eq.f32.partialorder %v221, %v256
      %v265 = vsel %vm257, %v231, 10
      %v266 = vsel %vm258, %v231, 10
      %v267 = vsel %vm259, %v231, 10
      %v268 = vsel %vm260, %v231, 10
      %v269 = vsel %vm261, %v231, 10
      %v270 = vsel %vm262, %v231, 10
      %v271 = vsel %vm263, %v231, 10
      %v272 = vsel %vm264, %v231, 10
      %v273 = vsel %vm232, %v265, 2147483647
      %v274 = vand.u32 %v273, 65535
      %v275 = vshra.s32 %v273, 16
      %v276 = vcvt.s32.f32 %v274
      %v277 = vcvt.s32.f32 %v275
      %278 = vmin.xlane.f32.xlu0 %v277
      %v279 = vpop.xlane.xlu0 %278
      %vm280 = vcmp.eq.f32.partialorder %v277, %v279
      %v281 = vsel %vm280, %v276, inf
      %282 = vmin.xlane.f32.xlu0 %v281
      %v283 = vpop.xlane.xlu0 %282
      %v284 = vcvt.f32.s32 %v283
      %v285 = vcvt.f32.s32 %v279
      %v286 = vshll.u32 %v285, 16
      %v287 = vadd.s32 %v286, %v284
      %v288 = vsel %vm232, %v266, 2147483647
      %v289 = vand.u32 %v288, 65535
      %v290 = vshra.s32 %v288, 16
      %v291 = vcvt.s32.f32 %v289
      %v292 = vcvt.s32.f32 %v290
      %293 = vmin.xlane.f32.xlu0 %v292
      %v294 = vpop.xlane.xlu0 %293
      %vm295 = vcmp.eq.f32.partialorder %v292, %v294
      %v296 = vsel %vm295, %v291, inf
      %297 = vmin.xlane.f32.xlu0 %v296
      %v298 = vpop.xlane.xlu0 %297
      %v299 = vcvt.f32.s32 %v298
      %v300 = vcvt.f32.s32 %v294
      %v301 = vshll.u32 %v300, 16
      %v302 = vadd.s32 %v301, %v299
      %v303 = vsel %vm232, %v267, 2147483647
      %v304 = vand.u32 %v303, 65535
      %v305 = vshra.s32 %v303, 16
      %v306 = vcvt.s32.f32 %v304
      %v307 = vcvt.s32.f32 %v305
      %308 = vmin.xlane.f32.xlu0 %v307
      %v309 = vpop.xlane.xlu0 %308
      %vm310 = vcmp.eq.f32.partialorder %v307, %v309
      %v311 = vsel %vm310, %v306, inf
      %312 = vmin.xlane.f32.xlu0 %v311
      %v313 = vpop.xlane.xlu0 %312
      %v314 = vcvt.f32.s32 %v313
      %v315 = vcvt.f32.s32 %v309
      %v316 = vshll.u32 %v315, 16
      %v317 = vadd.s32 %v316, %v314
      %v318 = vsel %vm232, %v268, 2147483647
      %v319 = vand.u32 %v318, 65535
      %v320 = vshra.s32 %v318, 16
      %v321 = vcvt.s32.f32 %v319
      %v322 = vcvt.s32.f32 %v320
      %323 = vmin.xlane.f32.xlu0 %v322
      %v324 = vpop.xlane.xlu0 %323
      %vm325 = vcmp.eq.f32.partialorder %v322, %v324
      %v326 = vsel %vm325, %v321, inf
      %327 = vmin.xlane.f32.xlu0 %v326
      %v328 = vpop.xlane.xlu0 %327
      %v329 = vcvt.f32.s32 %v328
      %v330 = vcvt.f32.s32 %v324
      %v331 = vshll.u32 %v330, 16
      %v332 = vadd.s32 %v331, %v329
      %v333 = vsel %vm232, %v269, 2147483647
      %v334 = vand.u32 %v333, 65535
      %v335 = vshra.s32 %v333, 16
      %v336 = vcvt.s32.f32 %v334
      %v337 = vcvt.s32.f32 %v335
      %338 = vmin.xlane.f32.xlu0 %v337
      %v339 = vpop.xlane.xlu0 %338
      %vm340 = vcmp.eq.f32.partialorder %v337, %v339
      %v341 = vsel %vm340, %v336, inf
      %342 = vmin.xlane.f32.xlu0 %v341
      %v343 = vpop.xlane.xlu0 %342
      %v344 = vcvt.f32.s32 %v343
      %v345 = vcvt.f32.s32 %v339
      %v346 = vshll.u32 %v345, 16
      %v347 = vadd.s32 %v346, %v344
      %v348 = vsel %vm232, %v270, 2147483647
      %v349 = vand.u32 %v348, 65535
      %v350 = vshra.s32 %v348, 16
      %v351 = vcvt.s32.f32 %v349
      %v352 = vcvt.s32.f32 %v350
      %353 = vmin.xlane.f32.xlu0 %v352
      %v354 = vpop.xlane.xlu0 %353
      %vm355 = vcmp.eq.f32.partialorder %v352, %v354
      %v356 = vsel %vm355, %v351, inf
      %357 = vmin.xlane.f32.xlu0 %v356
      %v358 = vpop.xlane.xlu0 %357
      %v359 = vcvt.f32.s32 %v358
      %v360 = vcvt.f32.s32 %v354
      %v361 = vshll.u32 %v360, 16
      %v362 = vadd.s32 %v361, %v359
      %v363 = vsel %vm232, %v271, 2147483647
      %v364 = vand.u32 %v363, 65535
      %v365 = vshra.s32 %v363, 16
      %v366 = vcvt.s32.f32 %v364
      %v367 = vcvt.s32.f32 %v365
      %368 = vmin.xlane.f32.xlu0 %v367
      %v369 = vpop.xlane.xlu0 %368
      %vm370 = vcmp.eq.f32.partialorder %v367, %v369
      %v371 = vsel %vm370, %v366, inf
      %372 = vmin.xlane.f32.xlu0 %v371
      %v373 = vpop.xlane.xlu0 %372
      %v374 = vcvt.f32.s32 %v373
      %v375 = vcvt.f32.s32 %v369
      %v376 = vshll.u32 %v375, 16
      %v377 = vadd.s32 %v376, %v374
      %v378 = vsel %vm232, %v272, 2147483647
      %v379 = vand.u32 %v378, 65535
      %v380 = vshra.s32 %v378, 16
      %v381 = vcvt.s32.f32 %v379
      %v382 = vcvt.s32.f32 %v380
      %383 = vmin.xlane.f32.xlu0 %v382
      %v384 = vpop.xlane.xlu0 %383
      %vm385 = vcmp.eq.f32.partialorder %v382, %v384
      %v386 = vsel %vm385, %v381, inf
      %387 = vmin.xlane.f32.xlu0 %v386
      %v388 = vpop.xlane.xlu0 %387
      %v389 = vcvt.f32.s32 %v388
      %v390 = vcvt.f32.s32 %v384
      %v391 = vshll.u32 %v390, 16
      %v392 = vadd.s32 %v391, %v389
      %s393 = smul.u32 %s17, 2
      %s394 = sadd.s32 %s393, %s18
      %s395 = smul.u32 %s394, 64
      %s396 = sadd.s32 %s395, 64
      %p397 = scmp.le.s32.totalorder %s396, 200
      // Predicated region
      $region33: #{tpu_custom_call.1} parent=27 // pred_check
        %p398 = pneg %p397
      $region34: #{tpu_custom_call.1} parent=27 // pred_check_branch
        %400 = sbr.rel (%p398) target = $region36
      $region35: #{tpu_custom_call.1} parent=27 // pred_region
        %vm401 = vcmp.eq.s32.totalorder %v231, %v287
        %vm402 = vcmp.eq.s32.totalorder %v231, %v302
        %vm403 = vcmp.eq.s32.totalorder %v231, %v317
        %vm404 = vcmp.eq.s32.totalorder %v231, %v332
        %vm405 = vcmp.eq.s32.totalorder %v231, %v347
        %vm406 = vcmp.eq.s32.totalorder %v231, %v362
        %vm407 = vcmp.eq.s32.totalorder %v231, %v377
        %vm408 = vcmp.eq.s32.totalorder %v231, %v392
        %409 = vset.pattern.permute.xlu0 0
        %410 = vperm.xlu0 %409, %v222
        %v411 = vpop.permute.xlu0 %410
        %412 = vset.pattern.permute.xlu0 0
        %413 = vperm.xlu0 %412, %v223
        %v414 = vpop.permute.xlu0 %413
        %415 = vset.pattern.permute.xlu0 0
        %416 = vperm.xlu0 %415, %v224
        %v417 = vpop.permute.xlu0 %416
        %418 = vset.pattern.permute.xlu0 0
        %419 = vperm.xlu0 %418, %v225
        %v420 = vpop.permute.xlu0 %419
        %421 = vset.pattern.permute.xlu0 0
        %422 = vperm.xlu0 %421, %v226
        %v423 = vpop.permute.xlu0 %422
        %424 = vset.pattern.permute.xlu0 0
        %425 = vperm.xlu0 %424, %v227
        %v426 = vpop.permute.xlu0 %425
        %427 = vset.pattern.permute.xlu0 0
        %428 = vperm.xlu0 %427, %v228
        %v429 = vpop.permute.xlu0 %428
        %430 = vset.pattern.permute.xlu0 0
        %431 = vperm.xlu0 %430, %v229
        %v432 = vpop.permute.xlu0 %431
        %vm433 = vcmp.eq.s32.totalorder %v231, %v411
        %vm434 = vcmp.eq.s32.totalorder %v231, %v414
        %vm435 = vcmp.eq.s32.totalorder %v231, %v417
        %vm436 = vcmp.eq.s32.totalorder %v231, %v420
        %vm437 = vcmp.eq.s32.totalorder %v231, %v423
        %vm438 = vcmp.eq.s32.totalorder %v231, %v426
        %vm439 = vcmp.eq.s32.totalorder %v231, %v429
        %vm440 = vcmp.eq.s32.totalorder %v231, %v432
        %v441 = vsel %vm401, 1, 0
        %v442 = vsel %vm402, 1, 0
        %v443 = vsel %vm403, 1, 0
        %v444 = vsel %vm404, 1, 0
        %v445 = vsel %vm405, 1, 0
        %v446 = vsel %vm406, 1, 0
        %v447 = vsel %vm407, 1, 0
        %v448 = vsel %vm408, 1, 0
        %v449 = vcvt.s32.f32 %v441
        %v450 = vcvt.s32.f32 %v442
        %v451 = vcvt.s32.f32 %v443
        %v452 = vcvt.s32.f32 %v444
        %v453 = vcvt.s32.f32 %v445
        %v454 = vcvt.s32.f32 %v446
        %v455 = vcvt.s32.f32 %v447
        %v456 = vcvt.s32.f32 %v448
        %v457 = vpack.c.bf16 %v450, %v449
        %v458 = vpack.c.bf16 %v452, %v451
        %v459 = vpack.c.bf16 %v454, %v453
        %v460 = vpack.c.bf16 %v456, %v455
        %v461 = vsel %vm433, 1, 0
        %v462 = vsel %vm434, 1, 0
        %v463 = vsel %vm435, 1, 0
        %v464 = vsel %vm436, 1, 0
        %v465 = vsel %vm437, 1, 0
        %v466 = vsel %vm438, 1, 0
        %v467 = vsel %vm439, 1, 0
        %v468 = vsel %vm440, 1, 0
        %v469 = vcvt.s32.f32 %v461
        %v470 = vcvt.s32.f32 %v462
        %v471 = vcvt.s32.f32 %v463
        %v472 = vcvt.s32.f32 %v464
        %v473 = vcvt.s32.f32 %v465
        %v474 = vcvt.s32.f32 %v466
        %v475 = vcvt.s32.f32 %v467
        %v476 = vcvt.s32.f32 %v468
        %v477 = vpack.c.bf16 %v470, %v469
        %v478 = vpack.c.bf16 %v472, %v471
        %v479 = vpack.c.bf16 %v474, %v473
        %v480 = vpack.c.bf16 %v476, %v475
        %v481 = vmul.bf16 %v457, %v477
        %v482 = vmul.bf16 %v458, %v478
        %v483 = vmul.bf16 %v459, %v479
        %v484 = vmul.bf16 %v460, %v480
        %vm485 = vcmask 523264
        %v487 = vsel %vm485, 1065369472, 0
        %489 = vmatprep.subr.bf16.mxu0 0
        %490 = vmatpush1.bf16.msra.mxu0 %v481
        %491 = vmatprep.subr.bf16.mxu0 0
        %492 = vmatpush1.bf16.msra.mxu0 %v482
        %493 = vmatprep.subr.bf16.mxu0 0
        %494 = vmatpush1.bf16.msra.mxu0 %v483
        %495 = vmatprep.subr.bf16.mxu0 0
        %496 = vmatpush1.bf16.msra.mxu0 %v484
        %497 = vmatprep.subr.bf16.mxu0 0
        %498 = vmatpush1.bf16.msra.mxu0 0
        %499 = vmatprep.subr.bf16.mxu0 0
        %500 = vmatpush1.bf16.msra.mxu0 0
        %501 = vmatprep.subr.bf16.mxu0 0
        %502 = vmatpush1.bf16.msra.mxu0 0
        %503 = vmatprep.subr.bf16.mxu0 0
        %504 = vmatpush1.bf16.msra.mxu0 0
        %505 = vmatprep.subr.bf16.mxu0 0
        %506 = vmatpush1.bf16.msra.mxu0 0
        %507 = vmatprep.subr.bf16.mxu0 0
        %508 = vmatpush1.bf16.msra.mxu0 0
        %509 = vmatprep.subr.bf16.mxu0 0
        %510 = vmatpush1.bf16.msra.mxu0 0
        %511 = vmatprep.subr.bf16.mxu0 0
        %512 = vmatpush1.bf16.msra.mxu0 0
        %513 = vmatprep.subr.bf16.mxu0 0
        %514 = vmatpush1.bf16.msra.mxu0 0
        %515 = vmatprep.subr.bf16.mxu0 0
        %516 = vmatpush1.bf16.msra.mxu0 0
        %517 = vmatprep.subr.bf16.mxu0 0
        %518 = vmatpush1.bf16.msra.mxu0 0
        %519 = vmatprep.subr.bf16.mxu0 0
        %520 = vmatpush1.bf16.msra.mxu0 0
        %521 = vmatprep.mubr.bf16.mxu0 0
        %522 = vmatmul.mubr.bf16.gmra.mrb[0].mxu0 %v487
        %v523 = vpop.f32.mrb[0].mxu0
        %v524 = vadd.f32 0.0, %v523
        %v525 = vpop.f32.mrb[0].mxu0
        %v526 = vpop.f32.mrb[0].mxu0
        %v527 = vpop.f32.mrb[0].mxu0
        %528 = vdwg.mxu0
        %529 = vmatprep.subr.bf16.mxu0 0
        %530 = vmatpush1.bf16.msra.mxu0 %v457
        %531 = vmatprep.subr.bf16.mxu0 0
        %532 = vmatpush1.bf16.msra.mxu0 %v458
        %533 = vmatprep.subr.bf16.mxu0 0
        %534 = vmatpush1.bf16.msra.mxu0 %v459
        %535 = vmatprep.subr.bf16.mxu0 0
        %536 = vmatpush1.bf16.msra.mxu0 %v460
        %537 = vmatprep.subr.bf16.mxu0 0
        %538 = vmatpush1.bf16.msra.mxu0 0
        %539 = vmatprep.subr.bf16.mxu0 0
        %540 = vmatpush1.bf16.msra.mxu0 0
        %541 = vmatprep.subr.bf16.mxu0 0
        %542 = vmatpush1.bf16.msra.mxu0 0
        %543 = vmatprep.subr.bf16.mxu0 0
        %544 = vmatpush1.bf16.msra.mxu0 0
        %545 = vmatprep.subr.bf16.mxu0 0
        %546 = vmatpush1.bf16.msra.mxu0 0
        %547 = vmatprep.subr.bf16.mxu0 0
        %548 = vmatpush1.bf16.msra.mxu0 0
        %549 = vmatprep.subr.bf16.mxu0 0
        %550 = vmatpush1.bf16.msra.mxu0 0
        %551 = vmatprep.subr.bf16.mxu0 0
        %552 = vmatpush1.bf16.msra.mxu0 0
        %553 = vmatprep.subr.bf16.mxu0 0
        %554 = vmatpush1.bf16.msra.mxu0 0
        %555 = vmatprep.subr.bf16.mxu0 0
        %556 = vmatpush1.bf16.msra.mxu0 0
        %557 = vmatprep.subr.bf16.mxu0 0
        %558 = vmatpush1.bf16.msra.mxu0 0
        %559 = vmatprep.subr.bf16.mxu0 0
        %560 = vmatpush1.bf16.msra.mxu0 0
        %561 = vmatprep.mubr.bf16.mxu0 0
        %562 = vmatmul.mubr.bf16.gmra.mrb[0].mxu0 %v487
        %v563 = vpop.f32.mrb[0].mxu0
        %v564 = vadd.f32 0.0, %v563
        %v565 = vpop.f32.mrb[0].mxu0
        %v566 = vpop.f32.mrb[0].mxu0
        %v567 = vpop.f32.mrb[0].mxu0
        %568 = vdwg.mxu0
        %569 = vmatprep.subr.bf16.mxu0 0
        %570 = vmatpush1.bf16.msra.mxu0 %v477
        %571 = vmatprep.subr.bf16.mxu0 0
        %572 = vmatpush1.bf16.msra.mxu0 %v478
        %573 = vmatprep.subr.bf16.mxu0 0
        %574 = vmatpush1.bf16.msra.mxu0 %v479
        %575 = vmatprep.subr.bf16.mxu0 0
        %576 = vmatpush1.bf16.msra.mxu0 %v480
        %577 = vmatprep.subr.bf16.mxu0 0
        %578 = vmatpush1.bf16.msra.mxu0 0
        %579 = vmatprep.subr.bf16.mxu0 0
        %580 = vmatpush1.bf16.msra.mxu0 0
        %581 = vmatprep.subr.bf16.mxu0 0
        %582 = vmatpush1.bf16.msra.mxu0 0
        %583 = vmatprep.subr.bf16.mxu0 0
        %584 = vmatpush1.bf16.msra.mxu0 0
        %585 = vmatprep.subr.bf16.mxu0 0
        %586 = vmatpush1.bf16.msra.mxu0 0
        %587 = vmatprep.subr.bf16.mxu0 0
        %588 = vmatpush1.bf16.msra.mxu0 0
        %589 = vmatprep.subr.bf16.mxu0 0
        %590 = vmatpush1.bf16.msra.mxu0 0
        %591 = vmatprep.subr.bf16.mxu0 0
        %592 = vmatpush1.bf16.msra.mxu0 0
        %593 = vmatprep.subr.bf16.mxu0 0
        %594 = vmatpush1.bf16.msra.mxu0 0
        %595 = vmatprep.subr.bf16.mxu0 0
        %596 = vmatpush1.bf16.msra.mxu0 0
        %597 = vmatprep.subr.bf16.mxu0 0
        %598 = vmatpush1.bf16.msra.mxu0 0
        %599 = vmatprep.subr.bf16.mxu0 0
        %600 = vmatpush1.bf16.msra.mxu0 0
        %601 = vmatprep.mubr.bf16.mxu0 0
        %602 = vmatmul.mubr.bf16.gmra.mrb[0].mxu0 %v487
        %v603 = vpop.f32.mrb[0].mxu0
        %v604 = vadd.f32 0.0, %v603
        %v605 = vpop.f32.mrb[0].mxu0
        %v606 = vpop.f32.mrb[0].mxu0
        %v607 = vpop.f32.mrb[0].mxu0
        %608 = vdwg.mxu0
        %v609 = vld [vmem:[%s205] sm:$0x1]
        %v610 = vcvt.f32.s32.to.zero.pseudo %v524
        %v611 = vadd.s32 %v609, %v610
        %vm612 = vcmask 73728
        %613 = vst.msk [vmem:[%s205] sm:$0x1] %vm612, %v611
        %v614 = vld [vmem:[%s205 + $0x1] sm:$0x1]
        %v615 = vcvt.f32.s32.to.zero.pseudo %v564
        %v616 = vadd.s32 %v614, %v615
        %617 = vst.msk [vmem:[%s205 + $0x1] sm:$0x1] %vm612, %v616
        %v618 = vld [vmem:[%s205 + $0x2] sm:$0x1]
        %v619 = vcvt.f32.s32.to.zero.pseudo %v604
        %v620 = vadd.s32 %v618, %v619
        %621 = vst.msk [vmem:[%s205 + $0x2] sm:$0x1] %vm612, %v620
      $region36: #{tpu_custom_call.1} parent=27 // pred_fallthru
        _
      %p622 = scmp.gt.s32.totalorder %s396, 200
      // Predicated region
      $region37: #{tpu_custom_call.1} parent=27 // pred_check
        %p623 = pneg %p622
      $region38: #{tpu_custom_call.1} parent=27 // pred_check_branch
        %625 = sbr.rel (%p623) target = $region40
      $region39: #{tpu_custom_call.1} parent=27 // pred_region
        %v626 = vlaneseq
        %v627 = vshrl.u32 %v626, 7
        %v628 = vadd.s32 %v627, 8
        %v629 = vadd.s32 %v627, 16
        %v630 = vadd.s32 %v627, 24
        %v631 = vadd.s32 %v627, 32
        %v632 = vadd.s32 %v627, 40
        %v633 = vadd.s32 %v627, 48
        %v634 = vadd.s32 %v627, 56
        %v635 = vstv %s395
        %v636 = vadd.s32 %v635, %v627
        %v637 = vadd.s32 %v635, %v628
        %v638 = vadd.s32 %v635, %v629
        %v639 = vadd.s32 %v635, %v630
        %v640 = vadd.s32 %v635, %v631
        %v641 = vadd.s32 %v635, %v632
        %v642 = vadd.s32 %v635, %v633
        %v643 = vadd.s32 %v635, %v634
        %vm644 = vcmp.lt.s32.totalorder %v636, 200
        %vm645 = vcmp.lt.s32.totalorder %v637, 200
        %vm646 = vcmp.lt.s32.totalorder %v638, 200
        %vm647 = vcmp.lt.s32.totalorder %v639, 200
        %vm648 = vcmp.lt.s32.totalorder %v640, 200
        %vm649 = vcmp.lt.s32.totalorder %v641, 200
        %vm650 = vcmp.lt.s32.totalorder %v642, 200
        %vm651 = vcmp.lt.s32.totalorder %v643, 200
        %vm652 = vcmp.eq.s32.totalorder %v231, %v287
        %vm653 = vcmp.eq.s32.totalorder %v231, %v302
        %vm654 = vcmp.eq.s32.totalorder %v231, %v317
        %vm655 = vcmp.eq.s32.totalorder %v231, %v332
        %vm656 = vcmp.eq.s32.totalorder %v231, %v347
        %vm657 = vcmp.eq.s32.totalorder %v231, %v362
        %vm658 = vcmp.eq.s32.totalorder %v231, %v377
        %vm659 = vcmp.eq.s32.totalorder %v231, %v392
        %660 = vset.pattern.permute.xlu0 0
        %661 = vperm.xlu0 %660, %v222
        %v662 = vpop.permute.xlu0 %661
        %663 = vset.pattern.permute.xlu0 0
        %664 = vperm.xlu0 %663, %v223
        %v665 = vpop.permute.xlu0 %664
        %666 = vset.pattern.permute.xlu0 0
        %667 = vperm.xlu0 %666, %v224
        %v668 = vpop.permute.xlu0 %667
        %669 = vset.pattern.permute.xlu0 0
        %670 = vperm.xlu0 %669, %v225
        %v671 = vpop.permute.xlu0 %670
        %672 = vset.pattern.permute.xlu0 0
        %673 = vperm.xlu0 %672, %v226
        %v674 = vpop.permute.xlu0 %673
        %675 = vset.pattern.permute.xlu0 0
        %676 = vperm.xlu0 %675, %v227
        %v677 = vpop.permute.xlu0 %676
        %678 = vset.pattern.permute.xlu0 0
        %679 = vperm.xlu0 %678, %v228
        %v680 = vpop.permute.xlu0 %679
        %681 = vset.pattern.permute.xlu0 0
        %682 = vperm.xlu0 %681, %v229
        %v683 = vpop.permute.xlu0 %682
        %vm684 = vcmp.eq.s32.totalorder %v231, %v662
        %vm685 = vcmp.eq.s32.totalorder %v231, %v665
        %vm686 = vcmp.eq.s32.totalorder %v231, %v668
        %vm687 = vcmp.eq.s32.totalorder %v231, %v671
        %vm688 = vcmp.eq.s32.totalorder %v231, %v674
        %vm689 = vcmp.eq.s32.totalorder %v231, %v677
        %vm690 = vcmp.eq.s32.totalorder %v231, %v680
        %vm691 = vcmp.eq.s32.totalorder %v231, %v683
        %v692 = vsel %vm644, 1, 0
        %v693 = vsel %vm645, 1, 0
        %v694 = vsel %vm646, 1, 0
        %v695 = vsel %vm647, 1, 0
        %v696 = vsel %vm648, 1, 0
        %v697 = vsel %vm649, 1, 0
        %v698 = vsel %vm650, 1, 0
        %v699 = vsel %vm651, 1, 0
        %vm700 = vcmp.eq.s32.totalorder %v692, 1
        %vm701 = vcmp.eq.s32.totalorder %v693, 1
        %vm702 = vcmp.eq.s32.totalorder %v694, 1
        %vm703 = vcmp.eq.s32.totalorder %v695, 1
        %vm704 = vcmp.eq.s32.totalorder %v696, 1
        %vm705 = vcmp.eq.s32.totalorder %v697, 1
        %vm706 = vcmp.eq.s32.totalorder %v698, 1
        %vm707 = vcmp.eq.s32.totalorder %v699, 1
        %vm708 = vmand %vm652, %vm700
        %vm709 = vmand %vm653, %vm701
        %vm710 = vmand %vm654, %vm702
        %vm711 = vmand %vm655, %vm703
        %vm712 = vmand %vm656, %vm704
        %vm713 = vmand %vm657, %vm705
        %vm714 = vmand %vm658, %vm706
        %vm715 = vmand %vm659, %vm707
        %vm716 = vmand %vm684, %vm700
        %vm717 = vmand %vm685, %vm701
        %vm718 = vmand %vm686, %vm702
        %vm719 = vmand %vm687, %vm703
        %vm720 = vmand %vm688, %vm704
        %vm721 = vmand %vm689, %vm705
        %vm722 = vmand %vm690, %vm706
        %vm723 = vmand %vm691, %vm707
        %v724 = vsel %vm708, 1, 0
        %v725 = vsel %vm709, 1, 0
        %v726 = vsel %vm710, 1, 0
        %v727 = vsel %vm711, 1, 0
        %v728 = vsel %vm712, 1, 0
        %v729 = vsel %vm713, 1, 0
        %v730 = vsel %vm714, 1, 0
        %v731 = vsel %vm715, 1, 0
        %v732 = vcvt.s32.f32 %v724
        %v733 = vcvt.s32.f32 %v725
        %v734 = vcvt.s32.f32 %v726
        %v735 = vcvt.s32.f32 %v727
        %v736 = vcvt.s32.f32 %v728
        %v737 = vcvt.s32.f32 %v729
        %v738 = vcvt.s32.f32 %v730
        %v739 = vcvt.s32.f32 %v731
        %v740 = vpack.c.bf16 %v733, %v732
        %v741 = vpack.c.bf16 %v735, %v734
        %v742 = vpack.c.bf16 %v737, %v736
        %v743 = vpack.c.bf16 %v739, %v738
        %v744 = vsel %vm716, 1, 0
        %v745 = vsel %vm717, 1, 0
        %v746 = vsel %vm718, 1, 0
        %v747 = vsel %vm719, 1, 0
        %v748 = vsel %vm720, 1, 0
        %v749 = vsel %vm721, 1, 0
        %v750 = vsel %vm722, 1, 0
        %v751 = vsel %vm723, 1, 0
        %v752 = vcvt.s32.f32 %v744
        %v753 = vcvt.s32.f32 %v745
        %v754 = vcvt.s32.f32 %v746
        %v755 = vcvt.s32.f32 %v747
        %v756 = vcvt.s32.f32 %v748
        %v757 = vcvt.s32.f32 %v749
        %v758 = vcvt.s32.f32 %v750
        %v759 = vcvt.s32.f32 %v751
        %v760 = vpack.c.bf16 %v753, %v752
        %v761 = vpack.c.bf16 %v755, %v754
        %v762 = vpack.c.bf16 %v757, %v756
        %v763 = vpack.c.bf16 %v759, %v758
        %v764 = vmul.bf16 %v740, %v760
        %v765 = vmul.bf16 %v741, %v761
        %v766 = vmul.bf16 %v742, %v762
        %v767 = vmul.bf16 %v743, %v763
        %vm768 = vcmask 523264
        %v770 = vsel %vm768, 1065369472, 0
        %772 = vmatprep.subr.bf16.mxu0 0
        %773 = vmatpush1.bf16.msra.mxu0 %v764
        %774 = vmatprep.subr.bf16.mxu0 0
        %775 = vmatpush1.bf16.msra.mxu0 %v765
        %776 = vmatprep.subr.bf16.mxu0 0
        %777 = vmatpush1.bf16.msra.mxu0 %v766
        %778 = vmatprep.subr.bf16.mxu0 0
        %779 = vmatpush1.bf16.msra.mxu0 %v767
        %780 = vmatprep.subr.bf16.mxu0 0
        %781 = vmatpush1.bf16.msra.mxu0 0
        %782 = vmatprep.subr.bf16.mxu0 0
        %783 = vmatpush1.bf16.msra.mxu0 0
        %784 = vmatprep.subr.bf16.mxu0 0
        %785 = vmatpush1.bf16.msra.mxu0 0
        %786 = vmatprep.subr.bf16.mxu0 0
        %787 = vmatpush1.bf16.msra.mxu0 0
        %788 = vmatprep.subr.bf16.mxu0 0
        %789 = vmatpush1.bf16.msra.mxu0 0
        %790 = vmatprep.subr.bf16.mxu0 0
        %791 = vmatpush1.bf16.msra.mxu0 0
        %792 = vmatprep.subr.bf16.mxu0 0
        %793 = vmatpush1.bf16.msra.mxu0 0
        %794 = vmatprep.subr.bf16.mxu0 0
        %795 = vmatpush1.bf16.msra.mxu0 0
        %796 = vmatprep.subr.bf16.mxu0 0
        %797 = vmatpush1.bf16.msra.mxu0 0
        %798 = vmatprep.subr.bf16.mxu0 0
        %799 = vmatpush1.bf16.msra.mxu0 0
        %800 = vmatprep.subr.bf16.mxu0 0
        %801 = vmatpush1.bf16.msra.mxu0 0
        %802 = vmatprep.subr.bf16.mxu0 0
        %803 = vmatpush1.bf16.msra.mxu0 0
        %804 = vmatprep.mubr.bf16.mxu0 0
        %805 = vmatmul.mubr.bf16.gmra.mrb[0].mxu0 %v770
        %v806 = vpop.f32.mrb[0].mxu0
        %v807 = vadd.f32 0.0, %v806
        %v808 = vpop.f32.mrb[0].mxu0
        %v809 = vpop.f32.mrb[0].mxu0
        %v810 = vpop.f32.mrb[0].mxu0
        %811 = vdwg.mxu0
        %812 = vmatprep.subr.bf16.mxu0 0
        %813 = vmatpush1.bf16.msra.mxu0 %v740
        %814 = vmatprep.subr.bf16.mxu0 0
        %815 = vmatpush1.bf16.msra.mxu0 %v741
        %816 = vmatprep.subr.bf16.mxu0 0
        %817 = vmatpush1.bf16.msra.mxu0 %v742
        %818 = vmatprep.subr.bf16.mxu0 0
        %819 = vmatpush1.bf16.msra.mxu0 %v743
        %820 = vmatprep.subr.bf16.mxu0 0
        %821 = vmatpush1.bf16.msra.mxu0 0
        %822 = vmatprep.subr.bf16.mxu0 0
        %823 = vmatpush1.bf16.msra.mxu0 0
        %824 = vmatprep.subr.bf16.mxu0 0
        %825 = vmatpush1.bf16.msra.mxu0 0
        %826 = vmatprep.subr.bf16.mxu0 0
        %827 = vmatpush1.bf16.msra.mxu0 0
        %828 = vmatprep.subr.bf16.mxu0 0
        %829 = vmatpush1.bf16.msra.mxu0 0
        %830 = vmatprep.subr.bf16.mxu0 0
        %831 = vmatpush1.bf16.msra.mxu0 0
        %832 = vmatprep.subr.bf16.mxu0 0
        %833 = vmatpush1.bf16.msra.mxu0 0
        %834 = vmatprep.subr.bf16.mxu0 0
        %835 = vmatpush1.bf16.msra.mxu0 0
        %836 = vmatprep.subr.bf16.mxu0 0
        %837 = vmatpush1.bf16.msra.mxu0 0
        %838 = vmatprep.subr.bf16.mxu0 0
        %839 = vmatpush1.bf16.msra.mxu0 0
        %840 = vmatprep.subr.bf16.mxu0 0
        %841 = vmatpush1.bf16.msra.mxu0 0
        %842 = vmatprep.subr.bf16.mxu0 0
        %843 = vmatpush1.bf16.msra.mxu0 0
        %844 = vmatprep.mubr.bf16.mxu0 0
        %845 = vmatmul.mubr.bf16.gmra.mrb[0].mxu0 %v770
        %v846 = vpop.f32.mrb[0].mxu0
        %v847 = vadd.f32 0.0, %v846
        %v848 = vpop.f32.mrb[0].mxu0
        %v849 = vpop.f32.mrb[0].mxu0
        %v850 = vpop.f32.mrb[0].mxu0
        %851 = vdwg.mxu0
        %852 = vmatprep.subr.bf16.mxu0 0
        %853 = vmatpush1.bf16.msra.mxu0 %v760
        %854 = vmatprep.subr.bf16.mxu0 0
        %855 = vmatpush1.bf16.msra.mxu0 %v761
        %856 = vmatprep.subr.bf16.mxu0 0
        %857 = vmatpush1.bf16.msra.mxu0 %v762
        %858 = vmatprep.subr.bf16.mxu0 0
        %859 = vmatpush1.bf16.msra.mxu0 %v763
        %860 = vmatprep.subr.bf16.mxu0 0
        %861 = vmatpush1.bf16.msra.mxu0 0
        %862 = vmatprep.subr.bf16.mxu0 0
        %863 = vmatpush1.bf16.msra.mxu0 0
        %864 = vmatprep.subr.bf16.mxu0 0
        %865 = vmatpush1.bf16.msra.mxu0 0
        %866 = vmatprep.subr.bf16.mxu0 0
        %867 = vmatpush1.bf16.msra.mxu0 0
        %868 = vmatprep.subr.bf16.mxu0 0
        %869 = vmatpush1.bf16.msra.mxu0 0
        %870 = vmatprep.subr.bf16.mxu0 0
        %871 = vmatpush1.bf16.msra.mxu0 0
        %872 = vmatprep.subr.bf16.mxu0 0
        %873 = vmatpush1.bf16.msra.mxu0 0
        %874 = vmatprep.subr.bf16.mxu0 0
        %875 = vmatpush1.bf16.msra.mxu0 0
        %876 = vmatprep.subr.bf16.mxu0 0
        %877 = vmatpush1.bf16.msra.mxu0 0
        %878 = vmatprep.subr.bf16.mxu0 0
        %879 = vmatpush1.bf16.msra.mxu0 0
        %880 = vmatprep.subr.bf16.mxu0 0
        %881 = vmatpush1.bf16.msra.mxu0 0
        %882 = vmatprep.subr.bf16.mxu0 0
        %883 = vmatpush1.bf16.msra.mxu0 0
        %884 = vmatprep.mubr.bf16.mxu0 0
        %885 = vmatmul.mubr.bf16.gmra.mrb[0].mxu0 %v770
        %v886 = vpop.f32.mrb[0].mxu0
        %v887 = vadd.f32 0.0, %v886
        %v888 = vpop.f32.mrb[0].mxu0
        %v889 = vpop.f32.mrb[0].mxu0
        %v890 = vpop.f32.mrb[0].mxu0
        %891 = vdwg.mxu0
        %v892 = vld [vmem:[%s205] sm:$0x1]
        %v893 = vcvt.f32.s32.to.zero.pseudo %v807
        %v894 = vadd.s32 %v892, %v893
        %vm895 = vcmask 73728
        %896 = vst.msk [vmem:[%s205] sm:$0x1] %vm895, %v894
        %v897 = vld [vmem:[%s205 + $0x1] sm:$0x1]
        %v898 = vcvt.f32.s32.to.zero.pseudo %v847
        %v899 = vadd.s32 %v897, %v898
        %900 = vst.msk [vmem:[%s205 + $0x1] sm:$0x1] %vm895, %v899
        %v901 = vld [vmem:[%s205 + $0x2] sm:$0x1]
        %v902 = vcvt.f32.s32.to.zero.pseudo %v887
        %v903 = vadd.s32 %v901, %v902
        %904 = vst.msk [vmem:[%s205 + $0x2] sm:$0x1] %vm895, %v903
      $region40: #{tpu_custom_call.1} parent=27 // pred_fallthru
        _
      %p905 = scmp.lt.s32.totalorder %s17, 1
      %s906 = scalar_select %p905, %s17, 1
      %s907 = smul.addr %s906, 4
      %s908 = scalar_lea.vmem %s2, %s907
      // Predicated region
      $region41: #{tpu_custom_call.1} parent=27 // pred_check
        %p909 = pneg %p103
      $region42: #{tpu_custom_call.1} parent=27 // pred_check_branch
        %911 = sbr.rel (%p909) target = $region44
      $region43: #{tpu_custom_call.1} parent=27 // pred_region
        _
      $region44: #{tpu_custom_call.1} parent=27 // pred_fallthru
        _
    $region28: #{tpu_custom_call.1} parent=5 // pred_fallthru
      _
    %p912 = scmp.le.s32.totalorder 2, %s8
    // Predicated region
    $region45: #{tpu_custom_call.1} parent=5 // pred_check
      %p913 = pneg %p912
    $region46: #{tpu_custom_call.1} parent=5 // pred_check_branch
      %915 = sbr.rel (%p913) target = $region48
    $region47: #{tpu_custom_call.1} parent=5 // pred_region
      %s916 = ssub.s32 %s8, 2
      // Predicated region
      $region49: #{tpu_custom_call.1} parent=47 // pred_check
        %p917 = pneg %p109
      $region50: #{tpu_custom_call.1} parent=47 // pred_check_branch
        %919 = sbr.rel (%p917) target = $region52
      $region51: #{tpu_custom_call.1} parent=47 // pred_region
        %p920 = scmp.lt.s32.totalorder %s19, 1
        %s921 = scalar_select %p920, %s19, 1
        %s922 = smul.addr %s921, 4
        %s923 = scalar_lea.vmem %s2, %s922
      $region52: #{tpu_custom_call.1} parent=47 // pred_fallthru
        _
    $region48: #{tpu_custom_call.1} parent=5 // pred_fallthru
      _
  $region6: #{tpu_custom_call.1} parent=0 // loop_footer
    %s12 = sadd.s32 1, %s8
  $region7: #{tpu_custom_call.1} parent=0 // loop_footer_branch
    %7 = sbr.rel target = $region3
  $region8: #{tpu_custom_call.1} parent=0 // loop_exit
    _

</llo_original>
